<compile_context>
chip_gen: v5e
topology: v5e:2x2
jax: 0.10.0
libtpu: 0.0.40
codegen_flags: <defaults>
</compile_context>

<pallas_src>
import functools

import jax
import jax.numpy as jnp
from jax import lax
from jax.experimental import pallas as pl
from jax.experimental.pallas import tpu as pltpu


def _round_up(x, m):
    return ((x + m - 1) // m) * m


def _r2_partials_kernel(y_pred_ref, y_true_ref, out_ref,
                        acc_y_ref, acc_y2_ref, acc_res_ref,
                        *, n_rows, tb, needs_mask):
    b = pl.program_id(1)               # batch (reduction) axis: last, arbitrary
    nb = pl.num_programs(1)

    @pl.when(b == 0)
    def _init():
        acc_y_ref[...] = jnp.zeros_like(acc_y_ref)
        acc_y2_ref[...] = jnp.zeros_like(acc_y2_ref)
        acc_res_ref[...] = jnp.zeros_like(acc_res_ref)

    y_true = y_true_ref[...]
    y_pred = y_pred_ref[...]
    # Accumulate in f32 regardless of input dtype (no-op for f32 inputs).
    if y_true.dtype != jnp.float32:
        y_true = y_true.astype(jnp.float32)
    if y_pred.dtype != jnp.float32:
        y_pred = y_pred.astype(jnp.float32)
    diff = y_true - y_pred

    td = y_true.shape[-1]
    groups = tb // 8

    def _accumulate(yt, df):
        # Reduce the (tb, td) tile only down to 8 sublanes: whole-vreg VALU
        # adds, no per-step cross-sublane reduce. 8 -> 1 happens in the wrapper.
        acc_y_ref[...] += jnp.sum(yt.reshape(groups, 8, td), axis=0)
        acc_y2_ref[...] += jnp.sum((yt * yt).reshape(groups, 8, td), axis=0)
        acc_res_ref[...] += jnp.sum((df * df).reshape(groups, 8, td), axis=0)

    if needs_mask:
        # Mask work only on the ragged last tile; full tiles stay mask-free.
        @pl.when(b < nb - 1)
        def _full_tile():
            _accumulate(y_true, diff)

        @pl.when(b == nb - 1)
        def _ragged_tile():
            row = b * tb + lax.broadcasted_iota(jnp.int32, (tb, 1), 0)
            valid = row < n_rows
            _accumulate(jnp.where(valid, y_true, 0.0),
                        jnp.where(valid, diff, 0.0))
    else:
        _accumulate(y_true, diff)

    @pl.when(b == nb - 1)
    def _finalize():
        # Dense (8, td) stores of the raw partials; r2 math is in the wrapper.
        out_ref[0] = acc_y_ref[...]
        out_ref[1] = acc_y2_ref[...]
        out_ref[2] = acc_res_ref[...]


def r2_loss(y_pred, y_true, *, vmem_budget_bytes=None):
    """R2Loss forward: scalar = 1 - mean_over_features(r2)."""
    assert y_pred.shape == y_true.shape
    assert y_pred.ndim == 2, "expected (batch, features)"
    n, d = y_true.shape
    itemsize = jnp.dtype(y_true.dtype).itemsize

    # --- lane folding for narrow feature dims (layout plumbing only) --------
    k = 1
    if d < 128 and 128 % d == 0:
        k = 128 // d                    # power of two since d divides 128
        while k > 1 and n % k != 0:
            k //= 2
    n_eff = n // k
    d_eff = d * k
    if k > 1:
        # Contiguous (N, D) -> (N//k, k*D): metadata-only, zero extra HBM IO.
        y_pred = y_pred.reshape(n_eff, d_eff)
        y_true = y_true.reshape(n_eff, d_eff)

    # --- feature split: independent halves for v7x's two TensorCores --------
    nf = 2 if (d_eff % 256 == 0) else 1
    td = d_eff // nf
    td_padded = _round_up(td, 128)      # real lane-padded VMEM width

    # --- batch tile sizing against the real (padded) VMEM footprint ---------
    packing = max(1, 4 // itemsize)     # f32: 1, bf16: 2, int8/fp8: 4
    sublane_mult = 8 * packing
    if vmem_budget_bytes is None:
        try:
            vmem_cap = pltpu.get_tpu_info().vmem_capacity_bytes
        except Exception:
            vmem_cap = 64 * 1024 * 1024            # conservative (v7x)
        vmem_budget_bytes = min(24 * 1024 * 1024, vmem_cap // 4)
    else:
        vmem_cap = 128 * 1024 * 1024
    # 2 inputs x 2 pipeline buffers, lane-padded width.
    bytes_per_row = 2 * 2 * td_padded * itemsize
    max_rows = max(sublane_mult, vmem_budget_bytes // max(bytes_per_row, 1))
    tb = min(_round_up(n_eff, sublane_mult),
             (max_rows // sublane_mult) * sublane_mult)
    tb = max(tb, sublane_mult)

    nb = pl.cdiv(n_eff, tb)
    needs_mask = (n_eff % tb) != 0

    # Explicit scoped-VMEM limit: actual footprint + headroom, capped safely.
    in_bytes = 2 * 2 * tb * td_padded * itemsize
    acc_bytes = 3 * 8 * td_padded * 4
    out_bytes = 2 * 3 * 8 * td_padded * 4
    vmem_limit = in_bytes + acc_bytes + out_bytes + 4 * 1024 * 1024
    vmem_limit = int(min(max(vmem_limit, 16 * 1024 * 1024), (vmem_cap * 3) // 4))

    kernel = functools.partial(
        _r2_partials_kernel, n_rows=n_eff, tb=tb, needs_mask=needs_mask)

    cost = pl.CostEstimate(
        flops=8 * n * d,
        transcendentals=0,
        bytes_accessed=2 * n * d * itemsize + 3 * 8 * d_eff * 4)

    partials = pl.pallas_call(
        kernel,
        out_shape=jax.ShapeDtypeStruct((3, 8, d_eff), jnp.float32),
        grid_spec=pltpu.PrefetchScalarGridSpec(
            num_scalar_prefetch=0,
            grid=(nf, nb),
            in_specs=[
                pl.BlockSpec((tb, td), lambda f, b: (b, f)),   # y_pred
                pl.BlockSpec((tb, td), lambda f, b: (b, f)),   # y_true
            ],
            out_specs=pl.BlockSpec((3, 8, td), lambda f, b: (0, 0, f)),
            scratch_shapes=[
                pltpu.VMEM((8, td), jnp.float32),   # partial sum(y)
                pltpu.VMEM((8, td), jnp.float32),   # partial sum(y*y)
                pltpu.VMEM((8, td), jnp.float32),   # partial sum((y-p)^2)
            ],
        ),
        compiler_params=pltpu.CompilerParams(
            dimension_semantics=("parallel", "arbitrary"),
            vmem_limit_bytes=vmem_limit,
        ),
        cost_estimate=cost,
    )(y_pred, y_true)

    # --- tiny O(D) epilogue in the wrapper -----------------------------------
    sums = jnp.sum(partials, axis=1)                    # (3, d_eff): 8 -> 1
    if k > 1:
        sums = jnp.sum(sums.reshape(3, k, d), axis=1)   # un-fold lane groups
    sum_y, sum_y2, sum_res = sums[0], sums[1], sums[2]
    inv_n = jnp.float32(1.0 / n)
    # sum((y - mean)^2) = sum(y^2) - sum(y)^2 / n
    ss_tot = sum_y2 - sum_y * (sum_y * inv_n)
    r2 = 1.0 - sum_res / ss_tot
    return 1.0 - jnp.mean(r2)


def r2_loss_ref(y_pred, y_true):
    # Pure-JAX reference (mirrors the PyTorch forward exactly), f32 math.
    y_true = y_true.astype(jnp.float32)
    y_pred = y_pred.astype(jnp.float32)
    y_true_mean = jnp.mean(y_true, axis=0)
    ss_tot = jnp.sum((y_true - y_true_mean) ** 2, axis=0)
    ss_res = jnp.sum((y_true - y_pred) ** 2, axis=0)
    r2 = 1.0 - ss_res / ss_tot
    return 1.0 - jnp.mean(r2)


if __name__ == "__main__":
    key = jax.random.PRNGKey(0)
    k1, k2, k3, k4, k5, k6, k7, k8 = jax.random.split(key, 8)

    # Test 1: small (batch=8, features=32) -> lane-folding path (k = 4).
    N, D = 8, 32
    y_true = jax.random.normal(k1, (N, D), dtype=jnp.float32)
    y_pred = y_true + 0.1 * jax.random.normal(k2, (N, D), dtype=jnp.float32)
    loss = jax.block_until_ready(r2_loss(y_pred, y_true))
    ref = jax.block_until_ready(r2_loss_ref(y_pred, y_true))
    assert jnp.allclose(loss, ref, rtol=1e-5, atol=1e-5), (loss, ref)

    # Test 2: multi-tile pipeline + ragged last tile (forced tiny budget).
    N2, D2 = 44, 128
    y_true2 = jax.random.normal(k3, (N2, D2), dtype=jnp.float32)
    y_pred2 = y_true2 + 0.1 * jax.random.normal(k4, (N2, D2), dtype=jnp.float32)
    loss2 = jax.block_until_ready(
        r2_loss(y_pred2, y_true2, vmem_budget_bytes=4096))
    ref2 = jax.block_until_ready(r2_loss_ref(y_pred2, y_true2))
    assert jnp.allclose(loss2, ref2, rtol=1e-5, atol=1e-5), (loss2, ref2)

    # Test 3: feature-split ("parallel") path, D % 256 == 0.
    N3, D3 = 64, 256
    y_true3 = jax.random.normal(k5, (N3, D3), dtype=jnp.float32)
    y_pred3 = y_true3 + 0.1 * jax.random.normal(k6, (N3, D3), dtype=jnp.float32)
    loss3 = jax.block_until_ready(r2_loss(y_pred3, y_true3))
    ref3 = jax.block_until_ready(r2_loss_ref(y_pred3, y_true3))
    assert jnp.allclose(loss3, ref3, rtol=1e-5, atol=1e-5), (loss3, ref3)

    # Test 4: bf16 inputs -> 16-row sublane packing + ragged last tile.
    N4, D4 = 40, 128
    y_true4 = jax.random.normal(k7, (N4, D4), dtype=jnp.float32).astype(jnp.bfloat16)
    y_pred4 = (y_true4.astype(jnp.float32)
               + 0.1 * jax.random.normal(k8, (N4, D4), dtype=jnp.float32)
               ).astype(jnp.bfloat16)
    loss4 = jax.block_until_ready(
        r2_loss(y_pred4, y_true4, vmem_budget_bytes=8192))
    ref4 = jax.block_until_ready(r2_loss_ref(y_pred4, y_true4))
    assert jnp.allclose(loss4, ref4, rtol=5e-2, atol=5e-2), (loss4, ref4)

    print("KERNEL_OK")
</pallas_src>

<mosaic_0001>
module attributes {stable_mosaic.version = 11 : i64} {
  func.func @_r2_partials_kernel(%arg0: i32, %arg1: i32, %arg2: memref<8x128xf32, #tpu.memory_space<vmem>>, %arg3: memref<8x128xf32, #tpu.memory_space<vmem>>, %arg4: memref<3x8x128xf32, #tpu.memory_space<vmem>>, %arg5: memref<8x128xf32, #tpu.memory_space<vmem>>, %arg6: memref<8x128xf32, #tpu.memory_space<vmem>>, %arg7: memref<8x128xf32, #tpu.memory_space<vmem>>) attributes {dimension_semantics = [#tpu.dimension_semantics<parallel>, #tpu.dimension_semantics<arbitrary>], iteration_bounds = array<i64: 1, 1>, scalar_prefetch = 0 : i64, scratch_operands = 3 : i64, tpu.core_type = #tpu.core_type<tc>, window_params = [{transform_indices = @transform_0, window_bounds = array<i64: 8, 128>}, {transform_indices = @transform_1, window_bounds = array<i64: 8, 128>}, {transform_indices = @transform_2, window_bounds = array<i64: 3, 8, 128>}]} {
    %c0_i32 = arith.constant 0 : i32
    %0 = arith.cmpi eq, %arg1, %c0_i32 : i32
    %1 = arith.extui %0 : i1 to i32
    %c0_i32_0 = arith.constant 0 : i32
    %2 = arith.cmpi ne, %1, %c0_i32_0 : i32
    scf.if %2 {
      %cst = arith.constant 0.000000e+00 : f32
      %15 = vector.broadcast %cst : f32 to vector<8x128xf32>
      %c0_10 = arith.constant 0 : index
      %c0_11 = arith.constant 0 : index
      %16 = vector.load %arg5[%c0_10, %c0_11] : memref<8x128xf32, #tpu.memory_space<vmem>>, vector<8x128xf32>
      tpu.vector_store %arg5[%c0_10, %c0_11], %15 {strides = array<i32>} : memref<8x128xf32, #tpu.memory_space<vmem>>, vector<8x128xf32>,
      %cst_12 = arith.constant 0.000000e+00 : f32
      %17 = vector.broadcast %cst_12 : f32 to vector<8x128xf32>
      %c0_13 = arith.constant 0 : index
      %c0_14 = arith.constant 0 : index
      %18 = vector.load %arg6[%c0_13, %c0_14] : memref<8x128xf32, #tpu.memory_space<vmem>>, vector<8x128xf32>
      tpu.vector_store %arg6[%c0_13, %c0_14], %17 {strides = array<i32>} : memref<8x128xf32, #tpu.memory_space<vmem>>, vector<8x128xf32>,
      %cst_15 = arith.constant 0.000000e+00 : f32
      %19 = vector.broadcast %cst_15 : f32 to vector<8x128xf32>
      %c0_16 = arith.constant 0 : index
      %c0_17 = arith.constant 0 : index
      %20 = vector.load %arg7[%c0_16, %c0_17] : memref<8x128xf32, #tpu.memory_space<vmem>>, vector<8x128xf32>
      tpu.vector_store %arg7[%c0_16, %c0_17], %19 {strides = array<i32>} : memref<8x128xf32, #tpu.memory_space<vmem>>, vector<8x128xf32>,
    } else {
    }
    %c0 = arith.constant 0 : index
    %c0_1 = arith.constant 0 : index
    %3 = vector.load %arg3[%c0, %c0_1] : memref<8x128xf32, #tpu.memory_space<vmem>>, vector<8x128xf32>
    %c0_2 = arith.constant 0 : index
    %c0_3 = arith.constant 0 : index
    %4 = vector.load %arg2[%c0_2, %c0_3] : memref<8x128xf32, #tpu.memory_space<vmem>>, vector<8x128xf32>
    %5 = arith.subf %3, %4 : vector<8x128xf32>
    %c0_i32_4 = arith.constant 0 : i32
    %6 = arith.cmpi slt, %arg1, %c0_i32_4 : i32
    %7 = arith.extui %6 : i1 to i32
    %c0_i32_5 = arith.constant 0 : i32
    %8 = arith.cmpi ne, %7, %c0_i32_5 : i32
    scf.if %8 {
      %c0_10 = arith.constant 0 : index
      %c0_11 = arith.constant 0 : index
      %15 = vector.load %arg5[%c0_10, %c0_11] : memref<8x128xf32, #tpu.memory_space<vmem>>, vector<8x128xf32>
      %16 = vector.shape_cast %3 : vector<8x128xf32> to vector<1x8x128xf32>
      %cst = arith.constant dense<0.000000e+00> : vector<8x128xf32>
      %17 = vector.multi_reduction <add>, %16, %cst [0] : vector<1x8x128xf32> to vector<8x128xf32>
      %18 = arith.addf %15, %17 : vector<8x128xf32>
      %c0_12 = arith.constant 0 : index
      %c0_13 = arith.constant 0 : index
      %19 = vector.load %arg5[%c0_12, %c0_13] : memref<8x128xf32, #tpu.memory_space<vmem>>, vector<8x128xf32>
      tpu.vector_store %arg5[%c0_12, %c0_13], %18 {strides = array<i32>} : memref<8x128xf32, #tpu.memory_space<vmem>>, vector<8x128xf32>,
      %c0_14 = arith.constant 0 : index
      %c0_15 = arith.constant 0 : index
      %20 = vector.load %arg6[%c0_14, %c0_15] : memref<8x128xf32, #tpu.memory_space<vmem>>, vector<8x128xf32>
      %21 = arith.mulf %3, %3 : vector<8x128xf32>
      %22 = vector.shape_cast %21 : vector<8x128xf32> to vector<1x8x128xf32>
      %cst_16 = arith.constant dense<0.000000e+00> : vector<8x128xf32>
      %23 = vector.multi_reduction <add>, %22, %cst_16 [0] : vector<1x8x128xf32> to vector<8x128xf32>
      %24 = arith.addf %20, %23 : vector<8x128xf32>
      %c0_17 = arith.constant 0 : index
      %c0_18 = arith.constant 0 : index
      %25 = vector.load %arg6[%c0_17, %c0_18] : memref<8x128xf32, #tpu.memory_space<vmem>>, vector<8x128xf32>
      tpu.vector_store %arg6[%c0_17, %c0_18], %24 {strides = array<i32>} : memref<8x128xf32, #tpu.memory_space<vmem>>, vector<8x128xf32>,
      %c0_19 = arith.constant 0 : index
      %c0_20 = arith.constant 0 : index
      %26 = vector.load %arg7[%c0_19, %c0_20] : memref<8x128xf32, #tpu.memory_space<vmem>>, vector<8x128xf32>
      %27 = arith.mulf %5, %5 : vector<8x128xf32>
      %28 = vector.shape_cast %27 : vector<8x128xf32> to vector<1x8x128xf32>
      %cst_21 = arith.constant dense<0.000000e+00> : vector<8x128xf32>
      %29 = vector.multi_reduction <add>, %28, %cst_21 [0] : vector<1x8x128xf32> to vector<8x128xf32>
      %30 = arith.addf %26, %29 : vector<8x128xf32>
      %c0_22 = arith.constant 0 : index
      %c0_23 = arith.constant 0 : index
      %31 = vector.load %arg7[%c0_22, %c0_23] : memref<8x128xf32, #tpu.memory_space<vmem>>, vector<8x128xf32>
      tpu.vector_store %arg7[%c0_22, %c0_23], %30 {strides = array<i32>} : memref<8x128xf32, #tpu.memory_space<vmem>>, vector<8x128xf32>,
    } else {
    }
    %c0_i32_6 = arith.constant 0 : i32
    %9 = arith.cmpi eq, %arg1, %c0_i32_6 : i32
    %10 = arith.extui %9 : i1 to i32
    %c0_i32_7 = arith.constant 0 : i32
    %11 = arith.cmpi ne, %10, %c0_i32_7 : i32
    scf.if %11 {
      %c8_i32 = arith.constant 8 : i32
      %15 = arith.muli %arg1, %c8_i32 : i32
      %16 = tpu.iota {dimensions = array<i32: 0>} : vector<8x1xi32>
      %17 = vector.broadcast %15 : i32 to vector<8x1xi32>
      %18 = arith.addi %17, %16 : vector<8x1xi32>
      %c2_i32 = arith.constant 2 : i32
      %19 = vector.broadcast %c2_i32 : i32 to vector<8x1xi32>
      %20 = arith.cmpi slt, %18, %19 : vector<8x1xi32>
      %cst = arith.constant 0.000000e+00 : f32
      %21 = vector.shape_cast %20 : vector<8x1xi1> to vector<8x1xi1>
      %22 = vector.broadcast %21 : vector<8x1xi1> to vector<8x128xi1>
      %23 = vector.broadcast %cst : f32 to vector<8x128xf32>
      %24 = arith.select %22, %3, %23 : vector<8x128xi1>, vector<8x128xf32>
      %cst_10 = arith.constant 0.000000e+00 : f32
      %25 = vector.shape_cast %20 : vector<8x1xi1> to vector<8x1xi1>
      %26 = vector.broadcast %25 : vector<8x1xi1> to vector<8x128xi1>
      %27 = vector.broadcast %cst_10 : f32 to vector<8x128xf32>
      %28 = arith.select %26, %5, %27 : vector<8x128xi1>, vector<8x128xf32>
      %c0_11 = arith.constant 0 : index
      %c0_12 = arith.constant 0 : index
      %29 = vector.load %arg5[%c0_11, %c0_12] : memref<8x128xf32, #tpu.memory_space<vmem>>, vector<8x128xf32>
      %30 = vector.shape_cast %24 : vector<8x128xf32> to vector<1x8x128xf32>
      %cst_13 = arith.constant dense<0.000000e+00> : vector<8x128xf32>
      %31 = vector.multi_reduction <add>, %30, %cst_13 [0] : vector<1x8x128xf32> to vector<8x128xf32>
      %32 = arith.addf %29, %31 : vector<8x128xf32>
      %c0_14 = arith.constant 0 : index
      %c0_15 = arith.constant 0 : index
      %33 = vector.load %arg5[%c0_14, %c0_15] : memref<8x128xf32, #tpu.memory_space<vmem>>, vector<8x128xf32>
      tpu.vector_store %arg5[%c0_14, %c0_15], %32 {strides = array<i32>} : memref<8x128xf32, #tpu.memory_space<vmem>>, vector<8x128xf32>,
      %c0_16 = arith.constant 0 : index
      %c0_17 = arith.constant 0 : index
      %34 = vector.load %arg6[%c0_16, %c0_17] : memref<8x128xf32, #tpu.memory_space<vmem>>, vector<8x128xf32>
      %35 = arith.mulf %24, %24 : vector<8x128xf32>
      %36 = vector.shape_cast %35 : vector<8x128xf32> to vector<1x8x128xf32>
      %cst_18 = arith.constant dense<0.000000e+00> : vector<8x128xf32>
      %37 = vector.multi_reduction <add>, %36, %cst_18 [0] : vector<1x8x128xf32> to vector<8x128xf32>
      %38 = arith.addf %34, %37 : vector<8x128xf32>
      %c0_19 = arith.constant 0 : index
      %c0_20 = arith.constant 0 : index
      %39 = vector.load %arg6[%c0_19, %c0_20] : memref<8x128xf32, #tpu.memory_space<vmem>>, vector<8x128xf32>
      tpu.vector_store %arg6[%c0_19, %c0_20], %38 {strides = array<i32>} : memref<8x128xf32, #tpu.memory_space<vmem>>, vector<8x128xf32>,
      %c0_21 = arith.constant 0 : index
      %c0_22 = arith.constant 0 : index
      %40 = vector.load %arg7[%c0_21, %c0_22] : memref<8x128xf32, #tpu.memory_space<vmem>>, vector<8x128xf32>
      %41 = arith.mulf %28, %28 : vector<8x128xf32>
      %42 = vector.shape_cast %41 : vector<8x128xf32> to vector<1x8x128xf32>
      %cst_23 = arith.constant dense<0.000000e+00> : vector<8x128xf32>
      %43 = vector.multi_reduction <add>, %42, %cst_23 [0] : vector<1x8x128xf32> to vector<8x128xf32>
      %44 = arith.addf %40, %43 : vector<8x128xf32>
      %c0_24 = arith.constant 0 : index
      %c0_25 = arith.constant 0 : index
      %45 = vector.load %arg7[%c0_24, %c0_25] : memref<8x128xf32, #tpu.memory_space<vmem>>, vector<8x128xf32>
      tpu.vector_store %arg7[%c0_24, %c0_25], %44 {strides = array<i32>} : memref<8x128xf32, #tpu.memory_space<vmem>>, vector<8x128xf32>,
    } else {
    }
    %c0_i32_8 = arith.constant 0 : i32
    %12 = arith.cmpi eq, %arg1, %c0_i32_8 : i32
    %13 = arith.extui %12 : i1 to i32
    %c0_i32_9 = arith.constant 0 : i32
    %14 = arith.cmpi ne, %13, %c0_i32_9 : i32
    scf.if %14 {
      %c0_10 = arith.constant 0 : index
      %c0_11 = arith.constant 0 : index
      %15 = vector.load %arg5[%c0_10, %c0_11] : memref<8x128xf32, #tpu.memory_space<vmem>>, vector<8x128xf32>
      %c0_12 = arith.constant 0 : index
      %c0_13 = arith.constant 0 : index
      %c0_14 = arith.constant 0 : index
      %16 = vector.load %arg4[%c0_12, %c0_13, %c0_14] : memref<3x8x128xf32, #tpu.memory_space<vmem>>, vector<1x8x128xf32>
      %17 = vector.shape_cast %16 : vector<1x8x128xf32> to vector<8x128xf32>
      %18 = vector.shape_cast %15 : vector<8x128xf32> to vector<1x8x128xf32>
      tpu.vector_store %arg4[%c0_12, %c0_13, %c0_14], %18 {strides = array<i32>} : memref<3x8x128xf32, #tpu.memory_space<vmem>>, vector<1x8x128xf32>,
      %c0_15 = arith.constant 0 : index
      %c0_16 = arith.constant 0 : index
      %19 = vector.load %arg6[%c0_15, %c0_16] : memref<8x128xf32, #tpu.memory_space<vmem>>, vector<8x128xf32>
      %c1 = arith.constant 1 : index
      %c0_17 = arith.constant 0 : index
      %c0_18 = arith.constant 0 : index
      %20 = vector.load %arg4[%c1, %c0_17, %c0_18] : memref<3x8x128xf32, #tpu.memory_space<vmem>>, vector<1x8x128xf32>
      %21 = vector.shape_cast %20 : vector<1x8x128xf32> to vector<8x128xf32>
      %22 = vector.shape_cast %19 : vector<8x128xf32> to vector<1x8x128xf32>
      tpu.vector_store %arg4[%c1, %c0_17, %c0_18], %22 {strides = array<i32>} : memref<3x8x128xf32, #tpu.memory_space<vmem>>, vector<1x8x128xf32>,
      %c0_19 = arith.constant 0 : index
      %c0_20 = arith.constant 0 : index
      %23 = vector.load %arg7[%c0_19, %c0_20] : memref<8x128xf32, #tpu.memory_space<vmem>>, vector<8x128xf32>
      %c2 = arith.constant 2 : index
      %c0_21 = arith.constant 0 : index
      %c0_22 = arith.constant 0 : index
      %24 = vector.load %arg4[%c2, %c0_21, %c0_22] : memref<3x8x128xf32, #tpu.memory_space<vmem>>, vector<1x8x128xf32>
      %25 = vector.shape_cast %24 : vector<1x8x128xf32> to vector<8x128xf32>
      %26 = vector.shape_cast %23 : vector<8x128xf32> to vector<1x8x128xf32>
      tpu.vector_store %arg4[%c2, %c0_21, %c0_22], %26 {strides = array<i32>} : memref<3x8x128xf32, #tpu.memory_space<vmem>>, vector<1x8x128xf32>,
    } else {
    }
    return
  }
  func.func @transform_0(%arg0: i32, %arg1: i32) -> (i32, i32) {
    %c0_i32 = arith.constant 0 : i32
    return %arg1, %arg0 : i32, i32
  }
  func.func @transform_1(%arg0: i32, %arg1: i32) -> (i32, i32) {
    %c0_i32 = arith.constant 0 : i32
    return %arg1, %arg0 : i32, i32
  }
  func.func @transform_2(%arg0: i32, %arg1: i32) -> (i32, i32, i32) {
    %c0_i32 = arith.constant 0 : i32
    %c0_i32_0 = arith.constant 0 : i32
    %c0_i32_1 = arith.constant 0 : i32
    return %c0_i32, %c0_i32_0, %arg0 : i32, i32, i32
  }
}

</mosaic_0001>

<llo_original>
// kernel: tpu_custom_call.1
$region0: #{tpu_custom_call.1}
  #allocation0 [shape = 'u32[]', space=smem, size = 0x4, offset = 0x4, fixed_abs, tag = 'smem constant byte address 0x4 - core index']
  #allocation1 [shape = 'u32[72,128]{1,0:T(1,128)}', space=vmem, size = 0x9000, scoped, tag = 'internal scratch']
  #allocation2 [shape = 'f32[8,128]{1,0:T(8,128)}', space=vmem, size = 0x1000, scoped, tag = 'scratch operand']
  #allocation3 [shape = 'f32[8,128]{1,0:T(8,128)}', space=vmem, size = 0x1000, scoped, tag = 'scratch operand']
  #allocation4 [shape = 'f32[8,128]{1,0:T(8,128)}', space=vmem, size = 0x1000, scoped, tag = 'scratch operand']
  %s0 = inlined_call_operand.hbm [shape: f32[2,128], index: 0, kind: input, shape index: {}]
  %s1 = inlined_call_operand.hbm [shape: f32[2,128], index: 1, kind: input, shape index: {}]
  %s2 = inlined_call_operand.hbm [shape: f32[3,8,128], index: 2, kind: output, shape index: {}]
  %s3 = sld [smem:[#allocation0]]
  $region38: #{tpu_custom_call.1} parent=0
    _
  %s5 = ssub.s32 1, %s3
  %s6 = scalar_select 0, %s5, %s3
  $region1: #{tpu_custom_call.1} parent=0
    #allocation5 [shape = 'u8[4096]{0}', space=vmem, size = 0x1000, scoped, tag = 'input window, operand 0, single buffered']
    #allocation6 [shape = 's32[1]{0}', space=sflag, size = 0x4, scoped, tag = 'scoped memory for tpu_custom_call.1']
    #allocation7 [shape = 's32[1]{0}', space=sflag, size = 0x4, scoped, tag = 'scoped memory for tpu_custom_call.1']
    #allocation8 [shape = 'u8[4096]{0}', space=vmem, size = 0x1000, scoped, tag = 'input window, operand 1, single buffered']
    #allocation9 [shape = 's32[1]{0}', space=sflag, size = 0x4, scoped, tag = 'scoped memory for tpu_custom_call.1']
    #allocation10 [shape = 'u8[12288]{0}', space=vmem, size = 0x3000, scoped, tag = 'output window, operand 0, single buffered']
    %7 = vsyncpa [#allocation6], 0
    %8 = vsyncpa [#allocation9], 0
    %9 = vsyncpa [#allocation7], 0
    // Predicated region
    $region2: #{tpu_custom_call.1} parent=1 // pred_check
      _
    $region3: #{tpu_custom_call.1} parent=1 // pred_check_branch
      %11 = sbr.rel (0) target = $region5
    $region4: #{tpu_custom_call.1} parent=1 // pred_region
      %13 = vsyncadd [#allocation6], 96
      %s14 = sshll.u32 %s0, 4
      %s15 = int_to_ptr.hbm [resolvable:$true] %s14
      %s16 = sshll.u32 [#allocation5], 4
      %s17 = int_to_ptr.vmem [resolvable:$true] %s16
      %22 = dma.hbm_to_vmem [thread:$0]  %s15, 32, %s17, [#allocation6], 32, 32, 2
    $region5: #{tpu_custom_call.1} parent=1 // pred_fallthru
      _
    // Predicated region
    $region6: #{tpu_custom_call.1} parent=1 // pred_check
      _
    $region7: #{tpu_custom_call.1} parent=1 // pred_check_branch
      %24 = sbr.rel (0) target = $region9
    $region8: #{tpu_custom_call.1} parent=1 // pred_region
      %26 = vsyncadd [#allocation9], 96
      %s27 = sshll.u32 %s1, 4
      %s28 = int_to_ptr.hbm [resolvable:$true] %s27
      %s29 = sshll.u32 [#allocation8], 4
      %s30 = int_to_ptr.vmem [resolvable:$true] %s29
      %35 = dma.hbm_to_vmem [thread:$0]  %s28, 32, %s30, [#allocation9], 32, 32, 2
    $region9: #{tpu_custom_call.1} parent=1 // pred_fallthru
      _
    // Predicated region
    $region10: #{tpu_custom_call.1} parent=1 // pred_check
      _
    $region11: #{tpu_custom_call.1} parent=1 // pred_check_branch
      %37 = sbr.rel (0) target = $region13
    $region12: #{tpu_custom_call.1} parent=1 // pred_region
      %39 = dma.done [#allocation6], 128
    $region13: #{tpu_custom_call.1} parent=1 // pred_fallthru
      _
    // Predicated region
    $region14: #{tpu_custom_call.1} parent=1 // pred_check
      _
    $region15: #{tpu_custom_call.1} parent=1 // pred_check_branch
      %41 = sbr.rel (0) target = $region17
    $region16: #{tpu_custom_call.1} parent=1 // pred_region
      %43 = dma.done [#allocation9], 128
    $region17: #{tpu_custom_call.1} parent=1 // pred_fallthru
      _
    %p44 = scmp.eq.s32.totalorder 0, 0
    // Predicated region
    $region18: #{tpu_custom_call.1} parent=1 // pred_check
      %p45 = pneg %p44
    $region19: #{tpu_custom_call.1} parent=1 // pred_check_branch
      %47 = sbr.rel (%p45) target = $region21
    $region20: #{tpu_custom_call.1} parent=1 // pred_region
      %48 = vst [vmem:[#allocation2] sm:$0xff] 0.0
      %49 = vst [vmem:[#allocation3] sm:$0xff] 0.0
      %50 = vst [vmem:[#allocation4] sm:$0xff] 0.0
    $region21: #{tpu_custom_call.1} parent=1 // pred_fallthru
      _
    %v51 = vld [vmem:[#allocation8] sm:$0xff]
    %v52 = vld [vmem:[#allocation5] sm:$0xff]
    %v53 = vsub.f32 %v51, %v52
    %p54 = scmp.lt.s32.totalorder 0, 0
    // Predicated region
    $region22: #{tpu_custom_call.1} parent=1 // pred_check
      %p55 = pneg %p54
    $region23: #{tpu_custom_call.1} parent=1 // pred_check_branch
      %57 = sbr.rel (%p55) target = $region25
    $region24: #{tpu_custom_call.1} parent=1 // pred_region
      %v58 = vld [vmem:[#allocation2] sm:$0xff]
      %v59 = vadd.f32 %v51, 0.0
      %v60 = vadd.f32 %v58, %v59
      %61 = vst [vmem:[#allocation2] sm:$0xff] %v60
      %v62 = vld [vmem:[#allocation3] sm:$0xff]
      %v63 = vmul.f32 %v51, %v51
      %v64 = vadd.f32 %v63, 0.0
      %v65 = vadd.f32 %v62, %v64
      %66 = vst [vmem:[#allocation3] sm:$0xff] %v65
      %v67 = vld [vmem:[#allocation4] sm:$0xff]
      %v68 = vmul.f32 %v53, %v53
      %v69 = vadd.f32 %v68, 0.0
      %v70 = vadd.f32 %v67, %v69
      %71 = vst [vmem:[#allocation4] sm:$0xff] %v70
    $region25: #{tpu_custom_call.1} parent=1 // pred_fallthru
      _
    // Predicated region
    $region26: #{tpu_custom_call.1} parent=1 // pred_check
      %p72 = pneg %p44
    $region27: #{tpu_custom_call.1} parent=1 // pred_check_branch
      %74 = sbr.rel (%p72) target = $region29
    $region28: #{tpu_custom_call.1} parent=1 // pred_region
      %s75 = smul.u32 0, 8
      %v76 = vlaneseq
      %v77 = vshrl.u32 %v76, 7
      %v78 = vstv %s75
      %v79 = vadd.s32 %v78, %v77
      %vm80 = vcmp.lt.s32.totalorder %v79, 2
      %v81 = vsel %vm80, 1, 0
      %vm82 = vcmp.eq.s32.totalorder %v81, 1
      %v83 = vsel %vm82, %v51, 0.0
      %v84 = vsel %vm82, %v53, 0.0
      %v85 = vld [vmem:[#allocation2] sm:$0xff]
      %v86 = vadd.f32 %v83, 0.0
      %v87 = vadd.f32 %v85, %v86
      %88 = vst [vmem:[#allocation2] sm:$0xff] %v87
      %v89 = vld [vmem:[#allocation3] sm:$0xff]
      %v90 = vmul.f32 %v83, %v83
      %v91 = vadd.f32 %v90, 0.0
      %v92 = vadd.f32 %v89, %v91
      %93 = vst [vmem:[#allocation3] sm:$0xff] %v92
      %v94 = vld [vmem:[#allocation4] sm:$0xff]
      %v95 = vmul.f32 %v84, %v84
      %v96 = vadd.f32 %v95, 0.0
      %v97 = vadd.f32 %v94, %v96
      %98 = vst [vmem:[#allocation4] sm:$0xff] %v97
      %v99 = vld [vmem:[#allocation2] sm:$0xff]
      %100 = vst [vmem:[#allocation10] sm:$0xff] %v99
      %v101 = vld [vmem:[#allocation3] sm:$0xff]
      %s102 = scalar_lea.vmem [#allocation10], 8
      %103 = vst [vmem:[%s102] sm:$0xff] %v101
      %v104 = vld [vmem:[#allocation4] sm:$0xff]
      %s105 = scalar_lea.vmem [#allocation10], 16
      %106 = vst [vmem:[%s105] sm:$0xff] %v104
    $region29: #{tpu_custom_call.1} parent=1 // pred_fallthru
      _
    // Predicated region
    $region30: #{tpu_custom_call.1} parent=1 // pred_check
      _
    $region31: #{tpu_custom_call.1} parent=1 // pred_check_branch
      %108 = sbr.rel (0) target = $region33
    $region32: #{tpu_custom_call.1} parent=1 // pred_region
      %110 = vsyncadd [#allocation7], 0
      %s111 = sshll.u32 [#allocation10], 4
      %s112 = int_to_ptr.vmem [resolvable:$true] %s111
      %s113 = sshll.u32 %s2, 4
      %s114 = int_to_ptr.hbm [resolvable:$true] %s113
      %119 = dma.vmem_to_hbm [thread:$0]  %s112, 384, %s114, [#allocation7], 128, 128, 8
    $region33: #{tpu_custom_call.1} parent=1 // pred_fallthru
      _
    // Predicated region
    $region34: #{tpu_custom_call.1} parent=1 // pred_check
      _
    $region35: #{tpu_custom_call.1} parent=1 // pred_check_branch
      %121 = sbr.rel (0) target = $region37
    $region36: #{tpu_custom_call.1} parent=1 // pred_region
      %123 = dma.done [#allocation7], 384
    $region37: #{tpu_custom_call.1} parent=1 // pred_fallthru
      _
    %124 = vsyncpa [#allocation6], 1
    %125 = vsyncpa [#allocation9], 1
    %126 = vsyncpa [#allocation7], 1

</llo_original>
